<compile_context>
chip_gen: v7x
topology: tpu7x:2x2x1
jax: 0.10.0
libtpu: 0.0.40
codegen_flags: <defaults>
</compile_context>

<pallas_src>
import functools

import jax
import jax.numpy as jnp
from jax import lax
from jax.experimental import pallas as pl
from jax.experimental.pallas import tpu as pltpu

LANE = 128


def rnn_kernel(x_ref, whiT_ref, whhT_ref, b_ref, h0_ref, o_ref):
    """Sequential RNN with residual connection (weights pre-transposed).

    Everything (projection, per-step hidden states) lives in vregs; the only
    VMEM traffic is the initial tile loads and one lane-dense output store.
    """
    n = x_ref.shape[0]           # static
    x = x_ref[...]               # (n, d_pad)
    whhT = whhT_ref[...]         # (d_pad, d_pad) == W_hh.T

    # Hoisted input projection + bias for ALL timesteps in one MXU matmul.
    # Kept as a register value (one f32 vreg at n=8, d_pad=128).
    proj = (
        jnp.dot(x, whiT_ref[...], preferred_element_type=jnp.float32)
        + b_ref[...]
    )

    # Serial recurrence: one dependent matmul + tanh per step, fully unrolled
    # with STATIC row slices so the LLO scheduler can overlap the next step's
    # MXU push with the current EUP tanh. h_t never touches VMEM.
    h = h0_ref[...].astype(jnp.float32)          # (1, d_pad)
    hs = []
    for t in range(n):                           # n is small & static
        h = jnp.tanh(
            proj[t:t + 1, :]
            + jnp.dot(h, whhT, preferred_element_type=jnp.float32)
        )
        hs.append(h)

    # Single lane-dense (n, 128) output store with the residual connection.
    h_all = jnp.concatenate(hs, axis=0)          # (n, d_pad), in vregs
    o_ref[...] = (h_all + x).astype(o_ref.dtype)


def _padded_dim(dims):
    return max(LANE, pl.cdiv(dims, LANE) * LANE)


def make_rnn_params(W_hi, W_hh, b, h0):
    """One-time parameter prep: transpose + zero-pad to a full 128-lane tile.

    Padded lanes stay exactly zero through the recurrence (tanh(0) = 0 and the
    residual adds a zero-padded input), so padding is numerically exact.
    """
    dims = W_hi.shape[0]
    d_pad = _padded_dim(dims)
    pad = d_pad - dims
    whiT = jnp.pad(W_hi.T.astype(jnp.float32), ((0, pad), (0, pad)))
    whhT = jnp.pad(W_hh.T.astype(jnp.float32), ((0, pad), (0, pad)))
    b_p = jnp.pad(b.astype(jnp.float32), (0, pad)).reshape(1, d_pad)
    h0_p = jnp.pad(h0.astype(jnp.float32), (0, pad)).reshape(1, d_pad)
    return whiT, whhT, b_p, h0_p


@functools.partial(jax.jit, static_argnames=("dims",))
def rnn_forward(inputs, whiT, whhT, b_p, h0_p, *, dims):
    """inputs: (n, dims) f32, pre-padded params -> outputs: (n, dims) f32."""
    n = inputs.shape[0]
    d_pad = whiT.shape[0]
    pad = d_pad - dims

    # Only the (tiny) input pad remains in the per-call hot path.
    x_p = jnp.pad(inputs.astype(jnp.float32), ((0, 0), (0, pad)))

    # TODO(synk): the module's forward is a single sequence; with no batch
    # axis there is nothing to shard across v7x's second TensorCore. If a
    # batch of sequences exists, add a leading "parallel" grid axis and keep
    # the weight index_maps at (0, 0) so weights stay VMEM-resident.
    out_p = pl.pallas_call(
        rnn_kernel,
        out_shape=jax.ShapeDtypeStruct((n, d_pad), inputs.dtype),
        grid=(1,),
        in_specs=[
            pl.BlockSpec((n, d_pad), lambda i: (0, 0)),
            pl.BlockSpec((d_pad, d_pad), lambda i: (0, 0)),
            pl.BlockSpec((d_pad, d_pad), lambda i: (0, 0)),
            pl.BlockSpec((1, d_pad), lambda i: (0, 0)),
            pl.BlockSpec((1, d_pad), lambda i: (0, 0)),
        ],
        out_specs=pl.BlockSpec((n, d_pad), lambda i: (0, 0)),
        compiler_params=pltpu.CompilerParams(
            dimension_semantics=("arbitrary",)),
    )(x_p, whiT, whhT, b_p, h0_p)

    # Lane-dense padded store inside the kernel; slice back to `dims` here
    # (do NOT narrow out_specs to 32 lanes — that would force masked stores).
    return out_p[:, :dims]


def rnn_forward_ref(inputs, W_hi, W_hh, b, h0):
    """Pure-JAX reference (mirrors the PyTorch forward loop)."""
    def step(h, x):
        h_new = jnp.tanh(W_hi @ x + W_hh @ h + b)
        return h_new, h_new + x
    _, outs = lax.scan(step, h0, inputs)
    return outs


if __name__ == "__main__":
    dims = 32
    n = 8

    key = jax.random.PRNGKey(0)
    k0, k1, k2, k3, k4 = jax.random.split(key, 5)
    # deterministic parameter init, matching torch.nn.init.normal_(std=0.01)
    h0 = 0.01 * jax.random.normal(k0, (dims,), dtype=jnp.float32)
    W_hi = 0.01 * jax.random.normal(k1, (dims, dims), dtype=jnp.float32)
    W_hh = 0.01 * jax.random.normal(k2, (dims, dims), dtype=jnp.float32)
    b = 0.01 * jax.random.normal(k3, (dims,), dtype=jnp.float32)

    inputs = jax.random.normal(k4, (n, dims), dtype=jnp.float32)

    # Parameter prep happens ONCE, outside the per-call hot path.
    whiT, whhT, b_p, h0_p = make_rnn_params(W_hi, W_hh, b, h0)
    whiT, whhT, b_p, h0_p = jax.block_until_ready((whiT, whhT, b_p, h0_p))

    out = rnn_forward(inputs, whiT, whhT, b_p, h0_p, dims=dims)
    out = jax.block_until_ready(out)

    ref = rnn_forward_ref(inputs, W_hi, W_hh, b, h0)
    assert out.shape == (n, dims)
    assert jnp.allclose(out, ref, atol=1e-4, rtol=1e-4), (
        float(jnp.max(jnp.abs(out - ref))))

    print("KERNEL_OK")
</pallas_src>

<mosaic_0001>
module attributes {stable_mosaic.version = 11 : i64} {
  func.func @rnn_kernel(%arg0: i32, %arg1: memref<8x128xf32, #tpu.memory_space<vmem>>, %arg2: memref<128x128xf32, #tpu.memory_space<vmem>>, %arg3: memref<128x128xf32, #tpu.memory_space<vmem>>, %arg4: memref<1x128xf32, #tpu.memory_space<vmem>>, %arg5: memref<1x128xf32, #tpu.memory_space<vmem>>, %arg6: memref<8x128xf32, #tpu.memory_space<vmem>>) attributes {dimension_semantics = [#tpu.dimension_semantics<arbitrary>], iteration_bounds = array<i64: 1>, scalar_prefetch = 0 : i64, scratch_operands = 0 : i64, tpu.core_type = #tpu.core_type<tc>, window_params = [{pipeline_mode = #tpu.pipeline_mode<synchronous>, transform_indices = @transform_0, window_bounds = array<i64: 8, 128>}, {pipeline_mode = #tpu.pipeline_mode<synchronous>, transform_indices = @transform_1, window_bounds = array<i64: 128, 128>}, {pipeline_mode = #tpu.pipeline_mode<synchronous>, transform_indices = @transform_2, window_bounds = array<i64: 128, 128>}, {pipeline_mode = #tpu.pipeline_mode<synchronous>, transform_indices = @transform_3, window_bounds = array<i64: 1, 128>}, {pipeline_mode = #tpu.pipeline_mode<synchronous>, transform_indices = @transform_4, window_bounds = array<i64: 1, 128>}, {pipeline_mode = #tpu.pipeline_mode<synchronous>, transform_indices = @transform_5, window_bounds = array<i64: 8, 128>}]} {
    %c0 = arith.constant 0 : index
    %c0_0 = arith.constant 0 : index
    %0 = vector.load %arg1[%c0, %c0_0] : memref<8x128xf32, #tpu.memory_space<vmem>>, vector<8x128xf32>
    %c0_1 = arith.constant 0 : index
    %c0_2 = arith.constant 0 : index
    %1 = vector.load %arg3[%c0_1, %c0_2] : memref<128x128xf32, #tpu.memory_space<vmem>>, vector<128x128xf32>
    %c0_3 = arith.constant 0 : index
    %c0_4 = arith.constant 0 : index
    %2 = vector.load %arg2[%c0_3, %c0_4] : memref<128x128xf32, #tpu.memory_space<vmem>>, vector<128x128xf32>
    %cst = arith.constant dense<0.000000e+00> : vector<8x128xf32>
    %3 = tpu.matmul %0, %2, %cst {dimension_numbers = #tpu.dot_dimension_numbers<[1], [0], [0], [1], [0, 0, 1, 1], [], []>} : vector<8x128xf32>, vector<128x128xf32>, vector<8x128xf32> -> vector<8x128xf32>
    %c0_5 = arith.constant 0 : index
    %c0_6 = arith.constant 0 : index
    %4 = vector.load %arg4[%c0_5, %c0_6] : memref<1x128xf32, #tpu.memory_space<vmem>>, vector<1x128xf32>
    %5 = vector.broadcast %4 : vector<1x128xf32> to vector<8x128xf32>
    %6 = arith.addf %3, %5 : vector<8x128xf32>
    %c0_7 = arith.constant 0 : index
    %c0_8 = arith.constant 0 : index
    %7 = vector.load %arg5[%c0_7, %c0_8] : memref<1x128xf32, #tpu.memory_space<vmem>>, vector<1x128xf32>
    %8 = vector.extract_strided_slice %6 {offsets = [0, 0], sizes = [1, 128], strides = [1, 1]} : vector<8x128xf32> to vector<1x128xf32>
    %cst_9 = arith.constant dense<0.000000e+00> : vector<1x128xf32>
    %9 = tpu.matmul %7, %1, %cst_9 {dimension_numbers = #tpu.dot_dimension_numbers<[1], [0], [0], [1], [0, 0, 1, 1], [], []>} : vector<1x128xf32>, vector<128x128xf32>, vector<1x128xf32> -> vector<1x128xf32>
    %10 = arith.addf %8, %9 : vector<1x128xf32>
    %11 = math.tanh %10 : vector<1x128xf32>
    %12 = vector.extract_strided_slice %6 {offsets = [1, 0], sizes = [1, 128], strides = [1, 1]} : vector<8x128xf32> to vector<1x128xf32>
    %cst_10 = arith.constant dense<0.000000e+00> : vector<1x128xf32>
    %13 = tpu.matmul %11, %1, %cst_10 {dimension_numbers = #tpu.dot_dimension_numbers<[1], [0], [0], [1], [0, 0, 1, 1], [], []>} : vector<1x128xf32>, vector<128x128xf32>, vector<1x128xf32> -> vector<1x128xf32>
    %14 = arith.addf %12, %13 : vector<1x128xf32>
    %15 = math.tanh %14 : vector<1x128xf32>
    %16 = vector.extract_strided_slice %6 {offsets = [2, 0], sizes = [1, 128], strides = [1, 1]} : vector<8x128xf32> to vector<1x128xf32>
    %cst_11 = arith.constant dense<0.000000e+00> : vector<1x128xf32>
    %17 = tpu.matmul %15, %1, %cst_11 {dimension_numbers = #tpu.dot_dimension_numbers<[1], [0], [0], [1], [0, 0, 1, 1], [], []>} : vector<1x128xf32>, vector<128x128xf32>, vector<1x128xf32> -> vector<1x128xf32>
    %18 = arith.addf %16, %17 : vector<1x128xf32>
    %19 = math.tanh %18 : vector<1x128xf32>
    %20 = vector.extract_strided_slice %6 {offsets = [3, 0], sizes = [1, 128], strides = [1, 1]} : vector<8x128xf32> to vector<1x128xf32>
    %cst_12 = arith.constant dense<0.000000e+00> : vector<1x128xf32>
    %21 = tpu.matmul %19, %1, %cst_12 {dimension_numbers = #tpu.dot_dimension_numbers<[1], [0], [0], [1], [0, 0, 1, 1], [], []>} : vector<1x128xf32>, vector<128x128xf32>, vector<1x128xf32> -> vector<1x128xf32>
    %22 = arith.addf %20, %21 : vector<1x128xf32>
    %23 = math.tanh %22 : vector<1x128xf32>
    %24 = vector.extract_strided_slice %6 {offsets = [4, 0], sizes = [1, 128], strides = [1, 1]} : vector<8x128xf32> to vector<1x128xf32>
    %cst_13 = arith.constant dense<0.000000e+00> : vector<1x128xf32>
    %25 = tpu.matmul %23, %1, %cst_13 {dimension_numbers = #tpu.dot_dimension_numbers<[1], [0], [0], [1], [0, 0, 1, 1], [], []>} : vector<1x128xf32>, vector<128x128xf32>, vector<1x128xf32> -> vector<1x128xf32>
    %26 = arith.addf %24, %25 : vector<1x128xf32>
    %27 = math.tanh %26 : vector<1x128xf32>
    %28 = vector.extract_strided_slice %6 {offsets = [5, 0], sizes = [1, 128], strides = [1, 1]} : vector<8x128xf32> to vector<1x128xf32>
    %cst_14 = arith.constant dense<0.000000e+00> : vector<1x128xf32>
    %29 = tpu.matmul %27, %1, %cst_14 {dimension_numbers = #tpu.dot_dimension_numbers<[1], [0], [0], [1], [0, 0, 1, 1], [], []>} : vector<1x128xf32>, vector<128x128xf32>, vector<1x128xf32> -> vector<1x128xf32>
    %30 = arith.addf %28, %29 : vector<1x128xf32>
    %31 = math.tanh %30 : vector<1x128xf32>
    %32 = vector.extract_strided_slice %6 {offsets = [6, 0], sizes = [1, 128], strides = [1, 1]} : vector<8x128xf32> to vector<1x128xf32>
    %cst_15 = arith.constant dense<0.000000e+00> : vector<1x128xf32>
    %33 = tpu.matmul %31, %1, %cst_15 {dimension_numbers = #tpu.dot_dimension_numbers<[1], [0], [0], [1], [0, 0, 1, 1], [], []>} : vector<1x128xf32>, vector<128x128xf32>, vector<1x128xf32> -> vector<1x128xf32>
    %34 = arith.addf %32, %33 : vector<1x128xf32>
    %35 = math.tanh %34 : vector<1x128xf32>
    %36 = vector.extract_strided_slice %6 {offsets = [7, 0], sizes = [1, 128], strides = [1, 1]} : vector<8x128xf32> to vector<1x128xf32>
    %cst_16 = arith.constant dense<0.000000e+00> : vector<1x128xf32>
    %37 = tpu.matmul %35, %1, %cst_16 {dimension_numbers = #tpu.dot_dimension_numbers<[1], [0], [0], [1], [0, 0, 1, 1], [], []>} : vector<1x128xf32>, vector<128x128xf32>, vector<1x128xf32> -> vector<1x128xf32>
    %38 = arith.addf %36, %37 : vector<1x128xf32>
    %39 = math.tanh %38 : vector<1x128xf32>
    %40 = tpu.concatenate %11, %15, %19, %23, %27, %31, %35, %39 in 0 : vector<1x128xf32>, vector<1x128xf32>, vector<1x128xf32>, vector<1x128xf32>, vector<1x128xf32>, vector<1x128xf32>, vector<1x128xf32>, vector<1x128xf32> -> vector<8x128xf32>
    %41 = arith.addf %40, %0 : vector<8x128xf32>
    %c0_17 = arith.constant 0 : index
    %c0_18 = arith.constant 0 : index
    %42 = vector.load %arg6[%c0_17, %c0_18] : memref<8x128xf32, #tpu.memory_space<vmem>>, vector<8x128xf32>
    tpu.vector_store %arg6[%c0_17, %c0_18], %41 {strides = array<i32>} : memref<8x128xf32, #tpu.memory_space<vmem>>, vector<8x128xf32>,
    return
  }
  func.func @transform_0(%arg0: i32) -> (i32, i32) {
    %c0_i32 = arith.constant 0 : i32
    %c0_i32_0 = arith.constant 0 : i32
    %c0_i32_1 = arith.constant 0 : i32
    return %c0_i32, %c0_i32_0 : i32, i32
  }
  func.func @transform_1(%arg0: i32) -> (i32, i32) {
    %c0_i32 = arith.constant 0 : i32
    %c0_i32_0 = arith.constant 0 : i32
    %c0_i32_1 = arith.constant 0 : i32
    return %c0_i32, %c0_i32_0 : i32, i32
  }
  func.func @transform_2(%arg0: i32) -> (i32, i32) {
    %c0_i32 = arith.constant 0 : i32
    %c0_i32_0 = arith.constant 0 : i32
    %c0_i32_1 = arith.constant 0 : i32
    return %c0_i32, %c0_i32_0 : i32, i32
  }
  func.func @transform_3(%arg0: i32) -> (i32, i32) {
    %c0_i32 = arith.constant 0 : i32
    %c0_i32_0 = arith.constant 0 : i32
    %c0_i32_1 = arith.constant 0 : i32
    return %c0_i32, %c0_i32_0 : i32, i32
  }
  func.func @transform_4(%arg0: i32) -> (i32, i32) {
    %c0_i32 = arith.constant 0 : i32
    %c0_i32_0 = arith.constant 0 : i32
    %c0_i32_1 = arith.constant 0 : i32
    return %c0_i32, %c0_i32_0 : i32, i32
  }
  func.func @transform_5(%arg0: i32) -> (i32, i32) {
    %c0_i32 = arith.constant 0 : i32
    %c0_i32_0 = arith.constant 0 : i32
    %c0_i32_1 = arith.constant 0 : i32
    return %c0_i32, %c0_i32_0 : i32, i32
  }
}

</mosaic_0001>

<llo_original>
// kernel: rnn_forward.1
$region0: #{rnn_forward.1}
  #allocation0 [shape = 'u32[]', space=smem, size = 0x4, offset = 0x4, fixed_abs, tag = 'smem constant byte address 0x4 - core index']
  #allocation1 [shape = 'u32[144,128]{1,0:T(1,128)}', space=vmem, size = 0x12000, scoped, tag = 'internal scratch']
  %s0 = inlined_call_operand.vmem [shape: f32[8,128], index: 0, kind: input, shape index: {}]
  %s1 = inlined_call_operand.hbm [shape: f32[128,128], index: 1, kind: input, shape index: {}]
  %s2 = inlined_call_operand.hbm [shape: f32[128,128], index: 2, kind: input, shape index: {}]
  %s3 = inlined_call_operand.vmem [shape: f32[1,128], index: 3, kind: input, shape index: {}]
  %s4 = inlined_call_operand.vmem [shape: f32[1,128], index: 4, kind: input, shape index: {}]
  %s5 = inlined_call_operand.hbm [shape: f32[8,128], index: 5, kind: output, shape index: {}]
  %s6 = sld [smem:[#allocation0]]
  $region38: #{rnn_forward.1} parent=0
    _
  %s8 = ssub.s32 1, %s6
  %s9 = scalar_select 0, %s8, %s6
  $region1: #{rnn_forward.1} parent=0
    #allocation2 [shape = 'u8[65536]{0}', space=vmem, size = 0x10000, scoped, tag = 'input window, operand 1, single buffered']
    #allocation3 [shape = 's32[1]{0}', space=sflag, size = 0x4, scoped, tag = 'scoped memory for rnn_forward.1']
    #allocation4 [shape = 's32[1]{0}', space=sflag, size = 0x4, scoped, tag = 'scoped memory for rnn_forward.1']
    #allocation5 [shape = 'u8[65536]{0}', space=vmem, size = 0x10000, scoped, tag = 'input window, operand 2, single buffered']
    #allocation6 [shape = 's32[1]{0}', space=sflag, size = 0x4, scoped, tag = 'scoped memory for rnn_forward.1']
    #allocation7 [shape = 'u8[4096]{0}', space=vmem, size = 0x1000, scoped, tag = 'output window, operand 0, single buffered']
    %10 = vsyncpa [#allocation3], 0
    %11 = vsyncpa [#allocation6], 0
    %12 = vsyncpa [#allocation4], 0
    // Predicated region
    $region2: #{rnn_forward.1} parent=1 // pred_check
      _
    $region3: #{rnn_forward.1} parent=1 // pred_check_branch
      %14 = sbr.rel (0) target = $region5
    $region4: #{rnn_forward.1} parent=1 // pred_region
      _
    $region5: #{rnn_forward.1} parent=1 // pred_fallthru
      _
    // Predicated region
    $region6: #{rnn_forward.1} parent=1 // pred_check
      _
    $region7: #{rnn_forward.1} parent=1 // pred_check_branch
      %16 = sbr.rel (0) target = $region9
    $region8: #{rnn_forward.1} parent=1 // pred_region
      %s18 = ssub.s32 2048, 2048
      %19 = vsyncadd [#allocation3], %s18
      %s20 = sshll.u32 [#allocation2], 4
      %s21 = int_to_ptr.vmem [resolvable:$true] %s20
      %26 = dma.hbm_to_vmem [thread:$0]  %s1, 2048, %s21, [#allocation3], 128, 128, 8
    $region9: #{rnn_forward.1} parent=1 // pred_fallthru
      _
    // Predicated region
    $region10: #{rnn_forward.1} parent=1 // pred_check
      _
    $region11: #{rnn_forward.1} parent=1 // pred_check_branch
      %28 = sbr.rel (0) target = $region13
    $region12: #{rnn_forward.1} parent=1 // pred_region
      %s30 = ssub.s32 2048, 2048
      %31 = vsyncadd [#allocation6], %s30
      %s32 = sshll.u32 [#allocation5], 4
      %s33 = int_to_ptr.vmem [resolvable:$true] %s32
      %38 = dma.hbm_to_vmem [thread:$0]  %s2, 2048, %s33, [#allocation6], 128, 128, 8
    $region13: #{rnn_forward.1} parent=1 // pred_fallthru
      _
    // Predicated region
    $region14: #{rnn_forward.1} parent=1 // pred_check
      _
    $region15: #{rnn_forward.1} parent=1 // pred_check_branch
      %40 = sbr.rel (0) target = $region17
    $region16: #{rnn_forward.1} parent=1 // pred_region
      _
    $region17: #{rnn_forward.1} parent=1 // pred_fallthru
      _
    // Predicated region
    $region18: #{rnn_forward.1} parent=1 // pred_check
      _
    $region19: #{rnn_forward.1} parent=1 // pred_check_branch
      %42 = sbr.rel (0) target = $region21
    $region20: #{rnn_forward.1} parent=1 // pred_region
      _
    $region21: #{rnn_forward.1} parent=1 // pred_fallthru
      _
    // Predicated region
    $region22: #{rnn_forward.1} parent=1 // pred_check
      _
    $region23: #{rnn_forward.1} parent=1 // pred_check_branch
      %44 = sbr.rel (0) target = $region25
    $region24: #{rnn_forward.1} parent=1 // pred_region
      %45 = dma.done [#allocation3], 2048
    $region25: #{rnn_forward.1} parent=1 // pred_fallthru
      _
    // Predicated region
    $region26: #{rnn_forward.1} parent=1 // pred_check
      _
    $region27: #{rnn_forward.1} parent=1 // pred_check_branch
      %47 = sbr.rel (0) target = $region29
    $region28: #{rnn_forward.1} parent=1 // pred_region
      %48 = dma.done [#allocation6], 2048
    $region29: #{rnn_forward.1} parent=1 // pred_fallthru
      _
    %v49 = vld [vmem:[%s0] sm:$0xff]
    %v50 = vld [vmem:[#allocation5] sm:$0xff]
    %v51 = vld [vmem:[#allocation5 + $0x8] sm:$0xff]
    %v52 = vld [vmem:[#allocation5 + $0x10] sm:$0xff]
    %v53 = vld [vmem:[#allocation5 + $0x18] sm:$0xff]
    %v54 = vld [vmem:[#allocation5 + $0x20] sm:$0xff]
    %v55 = vld [vmem:[#allocation5 + $0x28] sm:$0xff]
    %v56 = vld [vmem:[#allocation5 + $0x30] sm:$0xff]
    %v57 = vld [vmem:[#allocation5 + $0x38] sm:$0xff]
    %v58 = vld [vmem:[#allocation5 + $0x40] sm:$0xff]
    %v59 = vld [vmem:[#allocation5 + $0x48] sm:$0xff]
    %v60 = vld [vmem:[#allocation5 + $0x50] sm:$0xff]
    %v61 = vld [vmem:[#allocation5 + $0x58] sm:$0xff]
    %v62 = vld [vmem:[#allocation5 + $0x60] sm:$0xff]
    %v63 = vld [vmem:[#allocation5 + $0x68] sm:$0xff]
    %v64 = vld [vmem:[#allocation5 + $0x70] sm:$0xff]
    %v65 = vld [vmem:[#allocation5 + $0x78] sm:$0xff]
    %v66 = vld [vmem:[#allocation2] sm:$0xff]
    %v67 = vld [vmem:[#allocation2 + $0x8] sm:$0xff]
    %v68 = vld [vmem:[#allocation2 + $0x10] sm:$0xff]
    %v69 = vld [vmem:[#allocation2 + $0x18] sm:$0xff]
    %v70 = vld [vmem:[#allocation2 + $0x20] sm:$0xff]
    %v71 = vld [vmem:[#allocation2 + $0x28] sm:$0xff]
    %v72 = vld [vmem:[#allocation2 + $0x30] sm:$0xff]
    %v73 = vld [vmem:[#allocation2 + $0x38] sm:$0xff]
    %v74 = vld [vmem:[#allocation2 + $0x40] sm:$0xff]
    %v75 = vld [vmem:[#allocation2 + $0x48] sm:$0xff]
    %v76 = vld [vmem:[#allocation2 + $0x50] sm:$0xff]
    %v77 = vld [vmem:[#allocation2 + $0x58] sm:$0xff]
    %v78 = vld [vmem:[#allocation2 + $0x60] sm:$0xff]
    %v79 = vld [vmem:[#allocation2 + $0x68] sm:$0xff]
    %v80 = vld [vmem:[#allocation2 + $0x70] sm:$0xff]
    %v81 = vld [vmem:[#allocation2 + $0x78] sm:$0xff]
    %v82 = vld [vmem:[%s3] sm:$0x1]
    %v84 = vlaneseq
    %v85 = vshrl.u32 %v84, 7
    %v86 = vsub.s32 0, %v85
    %v87 = vrot.slane %v82, %v86
    %89 = vmatprep.subr.mxu0 0.0
    %90 = vmatpush1.msra.mxu0 %v66
    %91 = vmatprep.subr.mxu0 0.0
    %92 = vmatpush1.msra.mxu0 %v67
    %93 = vmatprep.subr.mxu0 0.0
    %94 = vmatpush1.msra.mxu0 %v68
    %95 = vmatprep.subr.mxu0 0.0
    %96 = vmatpush1.msra.mxu0 %v69
    %97 = vmatprep.subr.mxu0 0.0
    %98 = vmatpush1.msra.mxu0 %v70
    %99 = vmatprep.subr.mxu0 0.0
    %100 = vmatpush1.msra.mxu0 %v71
    %101 = vmatprep.subr.mxu0 0.0
    %102 = vmatpush1.msra.mxu0 %v72
    %103 = vmatprep.subr.mxu0 0.0
    %104 = vmatpush1.msra.mxu0 %v73
    %105 = vmatprep.subr.mxu0 0.0
    %106 = vmatpush1.msra.mxu0 %v74
    %107 = vmatprep.subr.mxu0 0.0
    %108 = vmatpush1.msra.mxu0 %v75
    %109 = vmatprep.subr.mxu0 0.0
    %110 = vmatpush1.msra.mxu0 %v76
    %111 = vmatprep.subr.mxu0 0.0
    %112 = vmatpush1.msra.mxu0 %v77
    %113 = vmatprep.subr.mxu0 0.0
    %114 = vmatpush1.msra.mxu0 %v78
    %115 = vmatprep.subr.mxu0 0.0
    %116 = vmatpush1.msra.mxu0 %v79
    %117 = vmatprep.subr.mxu0 0.0
    %118 = vmatpush1.msra.mxu0 %v80
    %119 = vmatprep.subr.mxu0 0.0
    %120 = vmatpush1.msra.mxu0 %v81
    %121 = vmatprep.subr.mxu0 0.0
    %122 = vmatpush1.msra.mxu0 0.0
    %123 = vmatprep.subr.mxu0 0.0
    %124 = vmatpush1.msra.mxu0 0.0
    %125 = vmatprep.subr.mxu0 0.0
    %126 = vmatpush1.msra.mxu0 0.0
    %127 = vmatprep.subr.mxu0 0.0
    %128 = vmatpush1.msra.mxu0 0.0
    %129 = vmatprep.subr.mxu0 0.0
    %130 = vmatpush1.msra.mxu0 0.0
    %131 = vmatprep.subr.mxu0 0.0
    %132 = vmatpush1.msra.mxu0 0.0
    %133 = vmatprep.subr.mxu0 0.0
    %134 = vmatpush1.msra.mxu0 0.0
    %135 = vmatprep.subr.mxu0 0.0
    %136 = vmatpush1.msra.mxu0 0.0
    %137 = vmatprep.subr.mxu0 0.0
    %138 = vmatpush1.msra.mxu0 0.0
    %139 = vmatprep.subr.mxu0 0.0
    %140 = vmatpush1.msra.mxu0 0.0
    %141 = vmatprep.subr.mxu0 0.0
    %142 = vmatpush1.msra.mxu0 0.0
    %143 = vmatprep.subr.mxu0 0.0
    %144 = vmatpush1.msra.mxu0 0.0
    %145 = vmatprep.subr.mxu0 0.0
    %146 = vmatpush1.msra.mxu0 0.0
    %147 = vmatprep.subr.mxu0 0.0
    %148 = vmatpush1.msra.mxu0 0.0
    %149 = vmatprep.subr.mxu0 0.0
    %150 = vmatpush1.msra.mxu0 0.0
    %151 = vmatprep.subr.mxu0 0.0
    %152 = vmatpush1.msra.mxu0 0.0
    %153 = vmatprep.mubr.f32.mxu0 0.0
    %154 = vmatmul.mubr.f32.gmra.mrb[0].mxu0 %v49
    %v155 = vpop.f32.mrb[0].mxu0
    %v156 = vadd.f32 %v87, %v155
    %v157 = vpop.f32.mrb[0].mxu0
    %158 = vdwg.mxu0
    %v159 = vld [vmem:[%s4] sm:$0x1]
    %160 = vmatprep.subr.mxu0 0.0
    %161 = vmatpush1.msra.mxu0 %v50
    %162 = vmatprep.subr.mxu0 0.0
    %163 = vmatpush1.msra.mxu0 %v51
    %164 = vmatprep.subr.mxu0 0.0
    %165 = vmatpush1.msra.mxu0 %v52
    %166 = vmatprep.subr.mxu0 0.0
    %167 = vmatpush1.msra.mxu0 %v53
    %168 = vmatprep.subr.mxu0 0.0
    %169 = vmatpush1.msra.mxu0 %v54
    %170 = vmatprep.subr.mxu0 0.0
    %171 = vmatpush1.msra.mxu0 %v55
    %172 = vmatprep.subr.mxu0 0.0
    %173 = vmatpush1.msra.mxu0 %v56
    %174 = vmatprep.subr.mxu0 0.0
    %175 = vmatpush1.msra.mxu0 %v57
    %176 = vmatprep.subr.mxu0 0.0
    %177 = vmatpush1.msra.mxu0 %v58
    %178 = vmatprep.subr.mxu0 0.0
    %179 = vmatpush1.msra.mxu0 %v59
    %180 = vmatprep.subr.mxu0 0.0
    %181 = vmatpush1.msra.mxu0 %v60
    %182 = vmatprep.subr.mxu0 0.0
    %183 = vmatpush1.msra.mxu0 %v61
    %184 = vmatprep.subr.mxu0 0.0
    %185 = vmatpush1.msra.mxu0 %v62
    %186 = vmatprep.subr.mxu0 0.0
    %187 = vmatpush1.msra.mxu0 %v63
    %188 = vmatprep.subr.mxu0 0.0
    %189 = vmatpush1.msra.mxu0 %v64
    %190 = vmatprep.subr.mxu0 0.0
    %191 = vmatpush1.msra.mxu0 %v65
    %192 = vmatprep.subr.mxu0 0.0
    %193 = vmatpush1.msra.mxu0 0.0
    %194 = vmatprep.subr.mxu0 0.0
    %195 = vmatpush1.msra.mxu0 0.0
    %196 = vmatprep.subr.mxu0 0.0
    %197 = vmatpush1.msra.mxu0 0.0
    %198 = vmatprep.subr.mxu0 0.0
    %199 = vmatpush1.msra.mxu0 0.0
    %200 = vmatprep.subr.mxu0 0.0
    %201 = vmatpush1.msra.mxu0 0.0
    %202 = vmatprep.subr.mxu0 0.0
    %203 = vmatpush1.msra.mxu0 0.0
    %204 = vmatprep.subr.mxu0 0.0
    %205 = vmatpush1.msra.mxu0 0.0
    %206 = vmatprep.subr.mxu0 0.0
    %207 = vmatpush1.msra.mxu0 0.0
    %208 = vmatprep.subr.mxu0 0.0
    %209 = vmatpush1.msra.mxu0 0.0
    %210 = vmatprep.subr.mxu0 0.0
    %211 = vmatpush1.msra.mxu0 0.0
    %212 = vmatprep.subr.mxu0 0.0
    %213 = vmatpush1.msra.mxu0 0.0
    %214 = vmatprep.subr.mxu0 0.0
    %215 = vmatpush1.msra.mxu0 0.0
    %216 = vmatprep.subr.mxu0 0.0
    %217 = vmatpush1.msra.mxu0 0.0
    %218 = vmatprep.subr.mxu0 0.0
    %219 = vmatpush1.msra.mxu0 0.0
    %220 = vmatprep.subr.mxu0 0.0
    %221 = vmatpush1.msra.mxu0 0.0
    %222 = vmatprep.subr.mxu0 0.0
    %223 = vmatpush1.msra.mxu0 0.0
    %224 = vmatprep.mubr.f32.mxu0 0.0
    %225 = vmatmul.mubr.f32.gmra.mrb[0].mxu0 %v159
    %v226 = vpop.f32.mrb[0].mxu0
    %v227 = vadd.f32 0.0, %v226
    %v228 = vpop.f32.mrb[0].mxu0
    %229 = vdwg.mxu0
    %v230 = vadd.f32 %v156, %v227
    %v231 = vtanh.pop %v230
    %232 = vmatprep.subr.mxu0 0.0
    %233 = vmatpush1.msra.mxu0 %v50
    %234 = vmatprep.subr.mxu0 0.0
    %235 = vmatpush1.msra.mxu0 %v51
    %236 = vmatprep.subr.mxu0 0.0
    %237 = vmatpush1.msra.mxu0 %v52
    %238 = vmatprep.subr.mxu0 0.0
    %239 = vmatpush1.msra.mxu0 %v53
    %240 = vmatprep.subr.mxu0 0.0
    %241 = vmatpush1.msra.mxu0 %v54
    %242 = vmatprep.subr.mxu0 0.0
    %243 = vmatpush1.msra.mxu0 %v55
    %244 = vmatprep.subr.mxu0 0.0
    %245 = vmatpush1.msra.mxu0 %v56
    %246 = vmatprep.subr.mxu0 0.0
    %247 = vmatpush1.msra.mxu0 %v57
    %248 = vmatprep.subr.mxu0 0.0
    %249 = vmatpush1.msra.mxu0 %v58
    %250 = vmatprep.subr.mxu0 0.0
    %251 = vmatpush1.msra.mxu0 %v59
    %252 = vmatprep.subr.mxu0 0.0
    %253 = vmatpush1.msra.mxu0 %v60
    %254 = vmatprep.subr.mxu0 0.0
    %255 = vmatpush1.msra.mxu0 %v61
    %256 = vmatprep.subr.mxu0 0.0
    %257 = vmatpush1.msra.mxu0 %v62
    %258 = vmatprep.subr.mxu0 0.0
    %259 = vmatpush1.msra.mxu0 %v63
    %260 = vmatprep.subr.mxu0 0.0
    %261 = vmatpush1.msra.mxu0 %v64
    %262 = vmatprep.subr.mxu0 0.0
    %263 = vmatpush1.msra.mxu0 %v65
    %264 = vmatprep.subr.mxu0 0.0
    %265 = vmatpush1.msra.mxu0 0.0
    %266 = vmatprep.subr.mxu0 0.0
    %267 = vmatpush1.msra.mxu0 0.0
    %268 = vmatprep.subr.mxu0 0.0
    %269 = vmatpush1.msra.mxu0 0.0
    %270 = vmatprep.subr.mxu0 0.0
    %271 = vmatpush1.msra.mxu0 0.0
    %272 = vmatprep.subr.mxu0 0.0
    %273 = vmatpush1.msra.mxu0 0.0
    %274 = vmatprep.subr.mxu0 0.0
    %275 = vmatpush1.msra.mxu0 0.0
    %276 = vmatprep.subr.mxu0 0.0
    %277 = vmatpush1.msra.mxu0 0.0
    %278 = vmatprep.subr.mxu0 0.0
    %279 = vmatpush1.msra.mxu0 0.0
    %280 = vmatprep.subr.mxu0 0.0
    %281 = vmatpush1.msra.mxu0 0.0
    %282 = vmatprep.subr.mxu0 0.0
    %283 = vmatpush1.msra.mxu0 0.0
    %284 = vmatprep.subr.mxu0 0.0
    %285 = vmatpush1.msra.mxu0 0.0
    %286 = vmatprep.subr.mxu0 0.0
    %287 = vmatpush1.msra.mxu0 0.0
    %288 = vmatprep.subr.mxu0 0.0
    %289 = vmatpush1.msra.mxu0 0.0
    %290 = vmatprep.subr.mxu0 0.0
    %291 = vmatpush1.msra.mxu0 0.0
    %292 = vmatprep.subr.mxu0 0.0
    %293 = vmatpush1.msra.mxu0 0.0
    %294 = vmatprep.subr.mxu0 0.0
    %295 = vmatpush1.msra.mxu0 0.0
    %296 = vmatprep.mubr.f32.mxu0 0.0
    %297 = vmatmul.mubr.f32.gmra.mrb[0].mxu0 %v231
    %v298 = vpop.f32.mrb[0].mxu0
    %v299 = vadd.f32 0.0, %v298
    %v300 = vpop.f32.mrb[0].mxu0
    %301 = vdwg.mxu0
    %v303 = vrot.slane %v299, 7
    %v305 = vadd.f32 %v156, %v303
    %v306 = vtanh.pop %v305
    %v308 = vrot.slane %v306, 1
    %310 = vmatprep.subr.mxu0 0.0
    %311 = vmatpush1.msra.mxu0 %v50
    %312 = vmatprep.subr.mxu0 0.0
    %313 = vmatpush1.msra.mxu0 %v51
    %314 = vmatprep.subr.mxu0 0.0
    %315 = vmatpush1.msra.mxu0 %v52
    %316 = vmatprep.subr.mxu0 0.0
    %317 = vmatpush1.msra.mxu0 %v53
    %318 = vmatprep.subr.mxu0 0.0
    %319 = vmatpush1.msra.mxu0 %v54
    %320 = vmatprep.subr.mxu0 0.0
    %321 = vmatpush1.msra.mxu0 %v55
    %322 = vmatprep.subr.mxu0 0.0
    %323 = vmatpush1.msra.mxu0 %v56
    %324 = vmatprep.subr.mxu0 0.0
    %325 = vmatpush1.msra.mxu0 %v57
    %326 = vmatprep.subr.mxu0 0.0
    %327 = vmatpush1.msra.mxu0 %v58
    %328 = vmatprep.subr.mxu0 0.0
    %329 = vmatpush1.msra.mxu0 %v59
    %330 = vmatprep.subr.mxu0 0.0
    %331 = vmatpush1.msra.mxu0 %v60
    %332 = vmatprep.subr.mxu0 0.0
    %333 = vmatpush1.msra.mxu0 %v61
    %334 = vmatprep.subr.mxu0 0.0
    %335 = vmatpush1.msra.mxu0 %v62
    %336 = vmatprep.subr.mxu0 0.0
    %337 = vmatpush1.msra.mxu0 %v63
    %338 = vmatprep.subr.mxu0 0.0
    %339 = vmatpush1.msra.mxu0 %v64
    %340 = vmatprep.subr.mxu0 0.0
    %341 = vmatpush1.msra.mxu0 %v65
    %342 = vmatprep.subr.mxu0 0.0
    %343 = vmatpush1.msra.mxu0 0.0
    %344 = vmatprep.subr.mxu0 0.0
    %345 = vmatpush1.msra.mxu0 0.0
    %346 = vmatprep.subr.mxu0 0.0
    %347 = vmatpush1.msra.mxu0 0.0
    %348 = vmatprep.subr.mxu0 0.0
    %349 = vmatpush1.msra.mxu0 0.0
    %350 = vmatprep.subr.mxu0 0.0
    %351 = vmatpush1.msra.mxu0 0.0
    %352 = vmatprep.subr.mxu0 0.0
    %353 = vmatpush1.msra.mxu0 0.0
    %354 = vmatprep.subr.mxu0 0.0
    %355 = vmatpush1.msra.mxu0 0.0
    %356 = vmatprep.subr.mxu0 0.0
    %357 = vmatpush1.msra.mxu0 0.0
    %358 = vmatprep.subr.mxu0 0.0
    %359 = vmatpush1.msra.mxu0 0.0
    %360 = vmatprep.subr.mxu0 0.0
    %361 = vmatpush1.msra.mxu0 0.0
    %362 = vmatprep.subr.mxu0 0.0
    %363 = vmatpush1.msra.mxu0 0.0
    %364 = vmatprep.subr.mxu0 0.0
    %365 = vmatpush1.msra.mxu0 0.0
    %366 = vmatprep.subr.mxu0 0.0
    %367 = vmatpush1.msra.mxu0 0.0
    %368 = vmatprep.subr.mxu0 0.0
    %369 = vmatpush1.msra.mxu0 0.0
    %370 = vmatprep.subr.mxu0 0.0
    %371 = vmatpush1.msra.mxu0 0.0
    %372 = vmatprep.subr.mxu0 0.0
    %373 = vmatpush1.msra.mxu0 0.0
    %374 = vmatprep.mubr.f32.mxu0 0.0
    %375 = vmatmul.mubr.f32.gmra.mrb[0].mxu0 %v308
    %v376 = vpop.f32.mrb[0].mxu0
    %v377 = vadd.f32 0.0, %v376
    %v378 = vpop.f32.mrb[0].mxu0
    %379 = vdwg.mxu0
    %v381 = vrot.slane %v377, 6
    %v383 = vadd.f32 %v156, %v381
    %v384 = vtanh.pop %v383
    %v386 = vrot.slane %v384, 2
    %388 = vmatprep.subr.mxu0 0.0
    %389 = vmatpush1.msra.mxu0 %v50
    %390 = vmatprep.subr.mxu0 0.0
    %391 = vmatpush1.msra.mxu0 %v51
    %392 = vmatprep.subr.mxu0 0.0
    %393 = vmatpush1.msra.mxu0 %v52
    %394 = vmatprep.subr.mxu0 0.0
    %395 = vmatpush1.msra.mxu0 %v53
    %396 = vmatprep.subr.mxu0 0.0
    %397 = vmatpush1.msra.mxu0 %v54
    %398 = vmatprep.subr.mxu0 0.0
    %399 = vmatpush1.msra.mxu0 %v55
    %400 = vmatprep.subr.mxu0 0.0
    %401 = vmatpush1.msra.mxu0 %v56
    %402 = vmatprep.subr.mxu0 0.0
    %403 = vmatpush1.msra.mxu0 %v57
    %404 = vmatprep.subr.mxu0 0.0
    %405 = vmatpush1.msra.mxu0 %v58
    %406 = vmatprep.subr.mxu0 0.0
    %407 = vmatpush1.msra.mxu0 %v59
    %408 = vmatprep.subr.mxu0 0.0
    %409 = vmatpush1.msra.mxu0 %v60
    %410 = vmatprep.subr.mxu0 0.0
    %411 = vmatpush1.msra.mxu0 %v61
    %412 = vmatprep.subr.mxu0 0.0
    %413 = vmatpush1.msra.mxu0 %v62
    %414 = vmatprep.subr.mxu0 0.0
    %415 = vmatpush1.msra.mxu0 %v63
    %416 = vmatprep.subr.mxu0 0.0
    %417 = vmatpush1.msra.mxu0 %v64
    %418 = vmatprep.subr.mxu0 0.0
    %419 = vmatpush1.msra.mxu0 %v65
    %420 = vmatprep.subr.mxu0 0.0
    %421 = vmatpush1.msra.mxu0 0.0
    %422 = vmatprep.subr.mxu0 0.0
    %423 = vmatpush1.msra.mxu0 0.0
    %424 = vmatprep.subr.mxu0 0.0
    %425 = vmatpush1.msra.mxu0 0.0
    %426 = vmatprep.subr.mxu0 0.0
    %427 = vmatpush1.msra.mxu0 0.0
    %428 = vmatprep.subr.mxu0 0.0
    %429 = vmatpush1.msra.mxu0 0.0
    %430 = vmatprep.subr.mxu0 0.0
    %431 = vmatpush1.msra.mxu0 0.0
    %432 = vmatprep.subr.mxu0 0.0
    %433 = vmatpush1.msra.mxu0 0.0
    %434 = vmatprep.subr.mxu0 0.0
    %435 = vmatpush1.msra.mxu0 0.0
    %436 = vmatprep.subr.mxu0 0.0
    %437 = vmatpush1.msra.mxu0 0.0
    %438 = vmatprep.subr.mxu0 0.0
    %439 = vmatpush1.msra.mxu0 0.0
    %440 = vmatprep.subr.mxu0 0.0
    %441 = vmatpush1.msra.mxu0 0.0
    %442 = vmatprep.subr.mxu0 0.0
    %443 = vmatpush1.msra.mxu0 0.0
    %444 = vmatprep.subr.mxu0 0.0
    %445 = vmatpush1.msra.mxu0 0.0
    %446 = vmatprep.subr.mxu0 0.0
    %447 = vmatpush1.msra.mxu0 0.0
    %448 = vmatprep.subr.mxu0 0.0
    %449 = vmatpush1.msra.mxu0 0.0
    %450 = vmatprep.subr.mxu0 0.0
    %451 = vmatpush1.msra.mxu0 0.0
    %452 = vmatprep.mubr.f32.mxu0 0.0
    %453 = vmatmul.mubr.f32.gmra.mrb[0].mxu0 %v386
    %v454 = vpop.f32.mrb[0].mxu0
    %v455 = vadd.f32 0.0, %v454
    %v456 = vpop.f32.mrb[0].mxu0
    %457 = vdwg.mxu0
    %v459 = vrot.slane %v455, 5
    %v461 = vadd.f32 %v156, %v459
    %v462 = vtanh.pop %v461
    %v464 = vrot.slane %v462, 3
    %466 = vmatprep.subr.mxu0 0.0
    %467 = vmatpush1.msra.mxu0 %v50
    %468 = vmatprep.subr.mxu0 0.0
    %469 = vmatpush1.msra.mxu0 %v51
    %470 = vmatprep.subr.mxu0 0.0
    %471 = vmatpush1.msra.mxu0 %v52
    %472 = vmatprep.subr.mxu0 0.0
    %473 = vmatpush1.msra.mxu0 %v53
    %474 = vmatprep.subr.mxu0 0.0
    %475 = vmatpush1.msra.mxu0 %v54
    %476 = vmatprep.subr.mxu0 0.0
    %477 = vmatpush1.msra.mxu0 %v55
    %478 = vmatprep.subr.mxu0 0.0
    %479 = vmatpush1.msra.mxu0 %v56
    %480 = vmatprep.subr.mxu0 0.0
    %481 = vmatpush1.msra.mxu0 %v57
    %482 = vmatprep.subr.mxu0 0.0
    %483 = vmatpush1.msra.mxu0 %v58
    %484 = vmatprep.subr.mxu0 0.0
    %485 = vmatpush1.msra.mxu0 %v59
    %486 = vmatprep.subr.mxu0 0.0
    %487 = vmatpush1.msra.mxu0 %v60
    %488 = vmatprep.subr.mxu0 0.0
    %489 = vmatpush1.msra.mxu0 %v61
    %490 = vmatprep.subr.mxu0 0.0
    %491 = vmatpush1.msra.mxu0 %v62
    %492 = vmatprep.subr.mxu0 0.0
    %493 = vmatpush1.msra.mxu0 %v63
    %494 = vmatprep.subr.mxu0 0.0
    %495 = vmatpush1.msra.mxu0 %v64
    %496 = vmatprep.subr.mxu0 0.0
    %497 = vmatpush1.msra.mxu0 %v65
    %498 = vmatprep.subr.mxu0 0.0
    %499 = vmatpush1.msra.mxu0 0.0
    %500 = vmatprep.subr.mxu0 0.0
    %501 = vmatpush1.msra.mxu0 0.0
    %502 = vmatprep.subr.mxu0 0.0
    %503 = vmatpush1.msra.mxu0 0.0
    %504 = vmatprep.subr.mxu0 0.0
    %505 = vmatpush1.msra.mxu0 0.0
    %506 = vmatprep.subr.mxu0 0.0
    %507 = vmatpush1.msra.mxu0 0.0
    %508 = vmatprep.subr.mxu0 0.0
    %509 = vmatpush1.msra.mxu0 0.0
    %510 = vmatprep.subr.mxu0 0.0
    %511 = vmatpush1.msra.mxu0 0.0
    %512 = vmatprep.subr.mxu0 0.0
    %513 = vmatpush1.msra.mxu0 0.0
    %514 = vmatprep.subr.mxu0 0.0
    %515 = vmatpush1.msra.mxu0 0.0
    %516 = vmatprep.subr.mxu0 0.0
    %517 = vmatpush1.msra.mxu0 0.0
    %518 = vmatprep.subr.mxu0 0.0
    %519 = vmatpush1.msra.mxu0 0.0
    %520 = vmatprep.subr.mxu0 0.0
    %521 = vmatpush1.msra.mxu0 0.0
    %522 = vmatprep.subr.mxu0 0.0
    %523 = vmatpush1.msra.mxu0 0.0
    %524 = vmatprep.subr.mxu0 0.0
    %525 = vmatpush1.msra.mxu0 0.0
    %526 = vmatprep.subr.mxu0 0.0
    %527 = vmatpush1.msra.mxu0 0.0
    %528 = vmatprep.subr.mxu0 0.0
    %529 = vmatpush1.msra.mxu0 0.0
    %530 = vmatprep.mubr.f32.mxu0 0.0
    %531 = vmatmul.mubr.f32.gmra.mrb[0].mxu0 %v464
    %v532 = vpop.f32.mrb[0].mxu0
    %v533 = vadd.f32 0.0, %v532
    %v534 = vpop.f32.mrb[0].mxu0
    %535 = vdwg.mxu0
    %v537 = vrot.slane %v533, 4
    %v539 = vadd.f32 %v156, %v537
    %v540 = vtanh.pop %v539
    %v542 = vrot.slane %v540, 4
    %544 = vmatprep.subr.mxu0 0.0
    %545 = vmatpush1.msra.mxu0 %v50
    %546 = vmatprep.subr.mxu0 0.0
    %547 = vmatpush1.msra.mxu0 %v51
    %548 = vmatprep.subr.mxu0 0.0
    %549 = vmatpush1.msra.mxu0 %v52
    %550 = vmatprep.subr.mxu0 0.0
    %551 = vmatpush1.msra.mxu0 %v53
    %552 = vmatprep.subr.mxu0 0.0
    %553 = vmatpush1.msra.mxu0 %v54
    %554 = vmatprep.subr.mxu0 0.0
    %555 = vmatpush1.msra.mxu0 %v55
    %556 = vmatprep.subr.mxu0 0.0
    %557 = vmatpush1.msra.mxu0 %v56
    %558 = vmatprep.subr.mxu0 0.0
    %559 = vmatpush1.msra.mxu0 %v57
    %560 = vmatprep.subr.mxu0 0.0
    %561 = vmatpush1.msra.mxu0 %v58
    %562 = vmatprep.subr.mxu0 0.0
    %563 = vmatpush1.msra.mxu0 %v59
    %564 = vmatprep.subr.mxu0 0.0
    %565 = vmatpush1.msra.mxu0 %v60
    %566 = vmatprep.subr.mxu0 0.0
    %567 = vmatpush1.msra.mxu0 %v61
    %568 = vmatprep.subr.mxu0 0.0
    %569 = vmatpush1.msra.mxu0 %v62
    %570 = vmatprep.subr.mxu0 0.0
    %571 = vmatpush1.msra.mxu0 %v63
    %572 = vmatprep.subr.mxu0 0.0
    %573 = vmatpush1.msra.mxu0 %v64
    %574 = vmatprep.subr.mxu0 0.0
    %575 = vmatpush1.msra.mxu0 %v65
    %576 = vmatprep.subr.mxu0 0.0
    %577 = vmatpush1.msra.mxu0 0.0
    %578 = vmatprep.subr.mxu0 0.0
    %579 = vmatpush1.msra.mxu0 0.0
    %580 = vmatprep.subr.mxu0 0.0
    %581 = vmatpush1.msra.mxu0 0.0
    %582 = vmatprep.subr.mxu0 0.0
    %583 = vmatpush1.msra.mxu0 0.0
    %584 = vmatprep.subr.mxu0 0.0
    %585 = vmatpush1.msra.mxu0 0.0
    %586 = vmatprep.subr.mxu0 0.0
    %587 = vmatpush1.msra.mxu0 0.0
    %588 = vmatprep.subr.mxu0 0.0
    %589 = vmatpush1.msra.mxu0 0.0
    %590 = vmatprep.subr.mxu0 0.0
    %591 = vmatpush1.msra.mxu0 0.0
    %592 = vmatprep.subr.mxu0 0.0
    %593 = vmatpush1.msra.mxu0 0.0
    %594 = vmatprep.subr.mxu0 0.0
    %595 = vmatpush1.msra.mxu0 0.0
    %596 = vmatprep.subr.mxu0 0.0
    %597 = vmatpush1.msra.mxu0 0.0
    %598 = vmatprep.subr.mxu0 0.0
    %599 = vmatpush1.msra.mxu0 0.0
    %600 = vmatprep.subr.mxu0 0.0
    %601 = vmatpush1.msra.mxu0 0.0
    %602 = vmatprep.subr.mxu0 0.0
    %603 = vmatpush1.msra.mxu0 0.0
    %604 = vmatprep.subr.mxu0 0.0
    %605 = vmatpush1.msra.mxu0 0.0
    %606 = vmatprep.subr.mxu0 0.0
    %607 = vmatpush1.msra.mxu0 0.0
    %608 = vmatprep.mubr.f32.mxu0 0.0
    %609 = vmatmul.mubr.f32.gmra.mrb[0].mxu0 %v542
    %v610 = vpop.f32.mrb[0].mxu0
    %v611 = vadd.f32 0.0, %v610
    %v612 = vpop.f32.mrb[0].mxu0
    %613 = vdwg.mxu0
    %v615 = vrot.slane %v611, 3
    %v617 = vadd.f32 %v156, %v615
    %v618 = vtanh.pop %v617
    %v620 = vrot.slane %v618, 5
    %622 = vmatprep.subr.mxu0 0.0
    %623 = vmatpush1.msra.mxu0 %v50
    %624 = vmatprep.subr.mxu0 0.0
    %625 = vmatpush1.msra.mxu0 %v51
    %626 = vmatprep.subr.mxu0 0.0
    %627 = vmatpush1.msra.mxu0 %v52
    %628 = vmatprep.subr.mxu0 0.0
    %629 = vmatpush1.msra.mxu0 %v53
    %630 = vmatprep.subr.mxu0 0.0
    %631 = vmatpush1.msra.mxu0 %v54
    %632 = vmatprep.subr.mxu0 0.0
    %633 = vmatpush1.msra.mxu0 %v55
    %634 = vmatprep.subr.mxu0 0.0
    %635 = vmatpush1.msra.mxu0 %v56
    %636 = vmatprep.subr.mxu0 0.0
    %637 = vmatpush1.msra.mxu0 %v57
    %638 = vmatprep.subr.mxu0 0.0
    %639 = vmatpush1.msra.mxu0 %v58
    %640 = vmatprep.subr.mxu0 0.0
    %641 = vmatpush1.msra.mxu0 %v59
    %642 = vmatprep.subr.mxu0 0.0
    %643 = vmatpush1.msra.mxu0 %v60
    %644 = vmatprep.subr.mxu0 0.0
    %645 = vmatpush1.msra.mxu0 %v61
    %646 = vmatprep.subr.mxu0 0.0
    %647 = vmatpush1.msra.mxu0 %v62
    %648 = vmatprep.subr.mxu0 0.0
    %649 = vmatpush1.msra.mxu0 %v63
    %650 = vmatprep.subr.mxu0 0.0
    %651 = vmatpush1.msra.mxu0 %v64
    %652 = vmatprep.subr.mxu0 0.0
    %653 = vmatpush1.msra.mxu0 %v65
    %654 = vmatprep.subr.mxu0 0.0
    %655 = vmatpush1.msra.mxu0 0.0
    %656 = vmatprep.subr.mxu0 0.0
    %657 = vmatpush1.msra.mxu0 0.0
    %658 = vmatprep.subr.mxu0 0.0
    %659 = vmatpush1.msra.mxu0 0.0
    %660 = vmatprep.subr.mxu0 0.0
    %661 = vmatpush1.msra.mxu0 0.0
    %662 = vmatprep.subr.mxu0 0.0
    %663 = vmatpush1.msra.mxu0 0.0
    %664 = vmatprep.subr.mxu0 0.0
    %665 = vmatpush1.msra.mxu0 0.0
    %666 = vmatprep.subr.mxu0 0.0
    %667 = vmatpush1.msra.mxu0 0.0
    %668 = vmatprep.subr.mxu0 0.0
    %669 = vmatpush1.msra.mxu0 0.0
    %670 = vmatprep.subr.mxu0 0.0
    %671 = vmatpush1.msra.mxu0 0.0
    %672 = vmatprep.subr.mxu0 0.0
    %673 = vmatpush1.msra.mxu0 0.0
    %674 = vmatprep.subr.mxu0 0.0
    %675 = vmatpush1.msra.mxu0 0.0
    %676 = vmatprep.subr.mxu0 0.0
    %677 = vmatpush1.msra.mxu0 0.0
    %678 = vmatprep.subr.mxu0 0.0
    %679 = vmatpush1.msra.mxu0 0.0
    %680 = vmatprep.subr.mxu0 0.0
    %681 = vmatpush1.msra.mxu0 0.0
    %682 = vmatprep.subr.mxu0 0.0
    %683 = vmatpush1.msra.mxu0 0.0
    %684 = vmatprep.subr.mxu0 0.0
    %685 = vmatpush1.msra.mxu0 0.0
    %686 = vmatprep.mubr.f32.mxu0 0.0
    %687 = vmatmul.mubr.f32.gmra.mrb[0].mxu0 %v620
    %v688 = vpop.f32.mrb[0].mxu0
    %v689 = vadd.f32 0.0, %v688
    %v690 = vpop.f32.mrb[0].mxu0
    %691 = vdwg.mxu0
    %v693 = vrot.slane %v689, 2
    %v695 = vadd.f32 %v156, %v693
    %v696 = vtanh.pop %v695
    %v698 = vrot.slane %v696, 6
    %700 = vmatprep.subr.mxu0 0.0
    %701 = vmatpush1.msra.mxu0 %v50
    %702 = vmatprep.subr.mxu0 0.0
    %703 = vmatpush1.msra.mxu0 %v51
    %704 = vmatprep.subr.mxu0 0.0
    %705 = vmatpush1.msra.mxu0 %v52
    %706 = vmatprep.subr.mxu0 0.0
    %707 = vmatpush1.msra.mxu0 %v53
    %708 = vmatprep.subr.mxu0 0.0
    %709 = vmatpush1.msra.mxu0 %v54
    %710 = vmatprep.subr.mxu0 0.0
    %711 = vmatpush1.msra.mxu0 %v55
    %712 = vmatprep.subr.mxu0 0.0
    %713 = vmatpush1.msra.mxu0 %v56
    %714 = vmatprep.subr.mxu0 0.0
    %715 = vmatpush1.msra.mxu0 %v57
    %716 = vmatprep.subr.mxu0 0.0
    %717 = vmatpush1.msra.mxu0 %v58
    %718 = vmatprep.subr.mxu0 0.0
    %719 = vmatpush1.msra.mxu0 %v59
    %720 = vmatprep.subr.mxu0 0.0
    %721 = vmatpush1.msra.mxu0 %v60
    %722 = vmatprep.subr.mxu0 0.0
    %723 = vmatpush1.msra.mxu0 %v61
    %724 = vmatprep.subr.mxu0 0.0
    %725 = vmatpush1.msra.mxu0 %v62
    %726 = vmatprep.subr.mxu0 0.0
    %727 = vmatpush1.msra.mxu0 %v63
    %728 = vmatprep.subr.mxu0 0.0
    %729 = vmatpush1.msra.mxu0 %v64
    %730 = vmatprep.subr.mxu0 0.0
    %731 = vmatpush1.msra.mxu0 %v65
    %732 = vmatprep.subr.mxu0 0.0
    %733 = vmatpush1.msra.mxu0 0.0
    %734 = vmatprep.subr.mxu0 0.0
    %735 = vmatpush1.msra.mxu0 0.0
    %736 = vmatprep.subr.mxu0 0.0
    %737 = vmatpush1.msra.mxu0 0.0
    %738 = vmatprep.subr.mxu0 0.0
    %739 = vmatpush1.msra.mxu0 0.0
    %740 = vmatprep.subr.mxu0 0.0
    %741 = vmatpush1.msra.mxu0 0.0
    %742 = vmatprep.subr.mxu0 0.0
    %743 = vmatpush1.msra.mxu0 0.0
    %744 = vmatprep.subr.mxu0 0.0
    %745 = vmatpush1.msra.mxu0 0.0
    %746 = vmatprep.subr.mxu0 0.0
    %747 = vmatpush1.msra.mxu0 0.0
    %748 = vmatprep.subr.mxu0 0.0
    %749 = vmatpush1.msra.mxu0 0.0
    %750 = vmatprep.subr.mxu0 0.0
    %751 = vmatpush1.msra.mxu0 0.0
    %752 = vmatprep.subr.mxu0 0.0
    %753 = vmatpush1.msra.mxu0 0.0
    %754 = vmatprep.subr.mxu0 0.0
    %755 = vmatpush1.msra.mxu0 0.0
    %756 = vmatprep.subr.mxu0 0.0
    %757 = vmatpush1.msra.mxu0 0.0
    %758 = vmatprep.subr.mxu0 0.0
    %759 = vmatpush1.msra.mxu0 0.0
    %760 = vmatprep.subr.mxu0 0.0
    %761 = vmatpush1.msra.mxu0 0.0
    %762 = vmatprep.subr.mxu0 0.0
    %763 = vmatpush1.msra.mxu0 0.0
    %764 = vmatprep.mubr.f32.mxu0 0.0
    %765 = vmatmul.mubr.f32.gmra.mrb[0].mxu0 %v698
    %v766 = vpop.f32.mrb[0].mxu0
    %v767 = vadd.f32 0.0, %v766
    %v768 = vpop.f32.mrb[0].mxu0
    %769 = vdwg.mxu0
    %v771 = vrot.slane %v767, 1
    %v773 = vadd.f32 %v156, %v771
    %v774 = vtanh.pop %v773
    %vm775 = vcmask 1040384
    %v776 = vsel %vm775, %v231, %v306
    %vm777 = vcmask 1041408
    %v778 = vsel %vm777, %v776, %v384
    %vm779 = vcmask 1042432
    %v780 = vsel %vm779, %v778, %v462
    %vm781 = vcmask 1043456
    %v782 = vsel %vm781, %v780, %v540
    %vm783 = vcmask 1044480
    %v784 = vsel %vm783, %v782, %v618
    %vm785 = vcmask 1045504
    %v786 = vsel %vm785, %v784, %v696
    %vm787 = vcmask 1046528
    %v788 = vsel %vm787, %v786, %v774
    %v789 = vadd.f32 %v788, %v49
    %790 = vst [vmem:[#allocation7] sm:$0xff] %v789
    // Predicated region
    $region30: #{rnn_forward.1} parent=1 // pred_check
      _
    $region31: #{rnn_forward.1} parent=1 // pred_check_branch
      %792 = sbr.rel (0) target = $region33
    $region32: #{rnn_forward.1} parent=1 // pred_region
      %s794 = ssub.s32 128, 128
      %795 = vsyncadd [#allocation4], %s794
      %s797 = sshll.u32 [#allocation7], 4
      %s798 = int_to_ptr.vmem [resolvable:$true] %s797
      %800 = dma.vmem_to_hbm [thread:$0]  %s798, 128, %s5, [#allocation4]
    $region33: #{rnn_forward.1} parent=1 // pred_fallthru
      _
    // Predicated region
    $region34: #{rnn_forward.1} parent=1 // pred_check
      _
    $region35: #{rnn_forward.1} parent=1 // pred_check_branch
      %802 = sbr.rel (0) target = $region37
    $region36: #{rnn_forward.1} parent=1 // pred_region
      %803 = dma.done [#allocation4], 128
    $region37: #{rnn_forward.1} parent=1 // pred_fallthru
      _
    %804 = vsyncpa [#allocation3], 1
    %805 = vsyncpa [#allocation6], 1
    %806 = vsyncpa [#allocation4], 1

</llo_original>
